<compile_context>
chip_gen: v6e
topology: v6e:2x2x1
jax: 0.10.0
libtpu: 0.0.40
codegen_flags: <defaults>
</compile_context>

<pallas_src>
import functools

import jax
import jax.numpy as jnp
from jax.experimental import pallas as pl
from jax.experimental.pallas import tpu as pltpu

_LANE = 128
_NEG_INF = -1e30  # bias value for padded logit lanes -> exp underflows to 0


def _cls_head_kernel(pooled_ref, wt_ref, b_ref, lbl_ref,
                     logits_ref, perex_ref, *, num_labels):
    """CLS-pooled Linear + per-example CrossEntropy for one batch tile.

    pooled_ref : [TB, H]    CLS-token hidden states (bf16 or f32)
    wt_ref     : [H, Lp]    fc weight transposed, lane-padded, same dtype as pooled
    b_ref      : [1, Lp]    fc bias (f32); padded lanes hold -1e30
    lbl_ref    : [TB, 1]    int32 labels (-100 / out-of-range => ignored)
    logits_ref : [TB, Lp]   f32 logits (padded lanes sliced off in wrapper)
    perex_ref  : [TB, 128]  f32 per-example CE loss (0 for ignored labels)
    """
    # Linear: MXU matmul in the input dtype, f32 accumulate.
    logits = jnp.dot(pooled_ref[...], wt_ref[...],
                     preferred_element_type=jnp.float32) + b_ref[...]
    logits_ref[...] = logits

    # Cross-entropy (all elementwise math in f32; exp/log go to the EUP).
    m = jnp.max(logits, axis=-1, keepdims=True)                          # [TB, 1]
    lse = jnp.log(jnp.sum(jnp.exp(logits - m), axis=-1, keepdims=True)) + m

    lbl = lbl_ref[...]                                                   # [TB, 1] i32
    lane = jax.lax.broadcasted_iota(jnp.int32, logits.shape, 1)          # [TB, Lp]
    tgt = jnp.sum(jnp.where(lane == lbl, logits, 0.0),
                  axis=-1, keepdims=True)                                # [TB, 1]

    valid = jnp.logical_and(lbl >= 0, lbl < num_labels)                  # ignore_index
    per_ex = jnp.where(valid, lse - tgt, 0.0)                            # [TB, 1]
    perex_ref[...] = jnp.broadcast_to(per_ex, perex_ref.shape)


def classifier_head(features, fc_weight, fc_bias, labels, num_labels, *, block_b=8):
    """CLS pooling -> dropout (eval: identity) -> Linear -> CrossEntropy (mean).

    features : [B, S, H] last_hidden_state (or pre-pooled [B, H]); any float dtype.
    fc_weight: [L, H]; fc_bias: [L]; labels: [B] int (label == -100 => ignored).
    Returns (logits [B, L] f32, loss scalar f32).
    """
    if features.ndim == 3:
        pooled = features[:, 0, :]   # CLS slice in the wrapper: no SxH over-fetch
    else:
        pooled = features
    B, H = pooled.shape
    L = int(num_labels)

    mm_dtype = pooled.dtype          # bf16 backbone -> bf16 MXU operands
    TB = block_b                     # multiple of 8 (sublane)
    B_pad = TB * pl.cdiv(B, TB)
    Lp = _LANE * pl.cdiv(L, _LANE)   # lane-dense logits output
    nb = B_pad // TB

    pooled_p = jnp.pad(pooled, ((0, B_pad - B), (0, 0))).astype(mm_dtype)
    lbl_p = jnp.pad(labels.astype(jnp.int32), (0, B_pad - B),
                    constant_values=-100).reshape(B_pad, 1)
    wt_p = jnp.pad(fc_weight.T, ((0, 0), (0, Lp - L))).astype(mm_dtype)   # [H, Lp]
    b_p = jnp.pad(fc_bias.astype(jnp.float32), (0, Lp - L),
                  constant_values=_NEG_INF).reshape(1, Lp)

    itemsize = jnp.dtype(mm_dtype).itemsize
    cost = pl.CostEstimate(
        flops=2 * B_pad * H * Lp,
        transcendentals=B_pad * (Lp + 1),
        bytes_accessed=(B_pad * H * itemsize + H * Lp * itemsize
                        + Lp * 4 + B_pad * 4
                        + B_pad * Lp * 4 + B_pad * _LANE * 4),
    )

    kernel = functools.partial(_cls_head_kernel, num_labels=L)
    logits_p, per_ex = pl.pallas_call(
        kernel,
        out_shape=(
            jax.ShapeDtypeStruct((B_pad, Lp), jnp.float32),
            jax.ShapeDtypeStruct((B_pad, _LANE), jnp.float32),
        ),
        grid=(nb,),
        in_specs=[
            pl.BlockSpec((TB, H), lambda i: (i, 0)),
            pl.BlockSpec((H, Lp), lambda i: (0, 0)),
            pl.BlockSpec((1, Lp), lambda i: (0, 0)),
            pl.BlockSpec((TB, 1), lambda i: (i, 0)),
        ],
        out_specs=(
            pl.BlockSpec((TB, Lp), lambda i: (i, 0)),
            pl.BlockSpec((TB, _LANE), lambda i: (i, 0)),
        ),
        compiler_params=pltpu.CompilerParams(
            dimension_semantics=("parallel",),
            vmem_limit_bytes=32 * 1024 * 1024),
        cost_estimate=cost,
    )(pooled_p, wt_p, b_p, lbl_p)

    logits = logits_p[:B, :L].astype(jnp.float32)
    # Mean over non-ignored labels (PyTorch CrossEntropyLoss semantics).
    valid = jnp.logical_and(labels >= 0, labels < L)
    count = jnp.maximum(jnp.sum(valid.astype(jnp.float32)), 1.0)
    loss = jnp.sum(per_ex[:B, 0]) / count
    return logits, loss


if __name__ == "__main__":
    # Small shapes consistent with the module's forward:
    #   B=12 examples, S=8 tokens, hidden_size H=128, num_labels L=8
    B, S, H, L = 12, 8, 128, 8

    key = jax.random.PRNGKey(0)
    k_feat, k_w, k_b, k_lbl = jax.random.split(key, 4)

    # Synthetic backbone output (stands in for AutoModel(...).last_hidden_state),
    # emitted in bf16 as a TPU backbone would.
    features = jax.random.normal(k_feat, (B, S, H), dtype=jnp.float32).astype(jnp.bfloat16)

    # Deterministic fc parameters (nn.Linear(H, L))
    fc_weight = jax.random.normal(k_w, (L, H), dtype=jnp.float32) * 0.02
    fc_bias = jax.random.normal(k_b, (L,), dtype=jnp.float32) * 0.01
    labels = jax.random.randint(k_lbl, (B,), 0, L, dtype=jnp.int32)

    run = jax.jit(functools.partial(classifier_head, num_labels=L))
    logits, loss = run(features, fc_weight, fc_bias, labels)
    jax.block_until_ready((logits, loss))

    # Plain-JAX f32 reference (bf16 matmul operands => relaxed tolerance).
    pooled_ref = features[:, 0, :].astype(jnp.float32)
    logits_ref = pooled_ref @ fc_weight.T + fc_bias
    logp = jax.nn.log_softmax(logits_ref, axis=-1)
    loss_ref = -jnp.mean(logp[jnp.arange(B), labels])
    assert jnp.allclose(logits, logits_ref, atol=2e-2, rtol=2e-2)
    assert jnp.allclose(loss, loss_ref, atol=2e-2, rtol=2e-2)

    print("KERNEL_OK")
</pallas_src>

<mosaic_0001>
module attributes {stable_mosaic.version = 11 : i64} {
  func.func @_cls_head_kernel(%arg0: i32, %arg1: memref<8x128xbf16, #tpu.memory_space<vmem>>, %arg2: memref<128x128xbf16, #tpu.memory_space<vmem>>, %arg3: memref<1x128xf32, #tpu.memory_space<vmem>>, %arg4: memref<8x1xi32, #tpu.memory_space<vmem>>, %arg5: memref<8x128xf32, #tpu.memory_space<vmem>>, %arg6: memref<8x128xf32, #tpu.memory_space<vmem>>) attributes {dimension_semantics = [#tpu.dimension_semantics<parallel>], iteration_bounds = array<i64: 2>, scalar_prefetch = 0 : i64, scratch_operands = 0 : i64, tpu.core_type = #tpu.core_type<tc>, window_params = [{transform_indices = @transform_0, window_bounds = array<i64: 8, 128>}, {pipeline_mode = #tpu.pipeline_mode<synchronous>, transform_indices = @transform_1, window_bounds = array<i64: 128, 128>}, {pipeline_mode = #tpu.pipeline_mode<synchronous>, transform_indices = @transform_2, window_bounds = array<i64: 1, 128>}, {transform_indices = @transform_3, window_bounds = array<i64: 8, 1>}, {transform_indices = @transform_4, window_bounds = array<i64: 8, 128>}, {transform_indices = @transform_5, window_bounds = array<i64: 8, 128>}]} {
    %c0 = arith.constant 0 : index
    %c0_0 = arith.constant 0 : index
    %0 = vector.load %arg1[%c0, %c0_0] : memref<8x128xbf16, #tpu.memory_space<vmem>>, vector<8x128xbf16>
    %c0_1 = arith.constant 0 : index
    %c0_2 = arith.constant 0 : index
    %1 = vector.load %arg2[%c0_1, %c0_2] : memref<128x128xbf16, #tpu.memory_space<vmem>>, vector<128x128xbf16>
    %cst = arith.constant dense<0.000000e+00> : vector<8x128xf32>
    %2 = tpu.matmul %0, %1, %cst {dimension_numbers = #tpu.dot_dimension_numbers<[1], [0], [0], [1], [0, 0, 1, 1], [], []>} : vector<8x128xbf16>, vector<128x128xbf16>, vector<8x128xf32> -> vector<8x128xf32>
    %c0_3 = arith.constant 0 : index
    %c0_4 = arith.constant 0 : index
    %3 = vector.load %arg3[%c0_3, %c0_4] : memref<1x128xf32, #tpu.memory_space<vmem>>, vector<1x128xf32>
    %4 = vector.broadcast %3 : vector<1x128xf32> to vector<8x128xf32>
    %5 = arith.addf %2, %4 : vector<8x128xf32>
    %c0_5 = arith.constant 0 : index
    %c0_6 = arith.constant 0 : index
    %6 = vector.load %arg5[%c0_5, %c0_6] : memref<8x128xf32, #tpu.memory_space<vmem>>, vector<8x128xf32>
    tpu.vector_store %arg5[%c0_5, %c0_6], %5 {strides = array<i32>} : memref<8x128xf32, #tpu.memory_space<vmem>>, vector<8x128xf32>,
    %cst_7 = arith.constant dense<0xFF800000> : vector<8xf32>
    %7 = vector.multi_reduction <maximumf>, %5, %cst_7 [1] : vector<8x128xf32> to vector<8xf32>
    %8 = vector.shape_cast %7 : vector<8xf32> to vector<8x1xf32>
    %9 = vector.broadcast %8 : vector<8x1xf32> to vector<8x128xf32>
    %10 = arith.subf %5, %9 : vector<8x128xf32>
    %11 = math.exp %10 : vector<8x128xf32>
    %cst_8 = arith.constant dense<0.000000e+00> : vector<8xf32>
    %12 = vector.multi_reduction <add>, %11, %cst_8 [1] : vector<8x128xf32> to vector<8xf32>
    %13 = vector.shape_cast %12 : vector<8xf32> to vector<8x1xf32>
    %14 = math.log %13 : vector<8x1xf32>
    %15 = arith.addf %14, %8 : vector<8x1xf32>
    %c0_9 = arith.constant 0 : index
    %c0_10 = arith.constant 0 : index
    %16 = vector.load %arg4[%c0_9, %c0_10] : memref<8x1xi32, #tpu.memory_space<vmem>>, vector<8x1xi32>
    %17 = tpu.iota {dimensions = array<i32: 1>} : vector<8x128xi32>
    %18 = vector.broadcast %16 : vector<8x1xi32> to vector<8x128xi32>
    %19 = arith.cmpi eq, %17, %18 : vector<8x128xi32>
    %cst_11 = arith.constant 0.000000e+00 : f32
    %20 = vector.broadcast %cst_11 : f32 to vector<8x128xf32>
    %21 = arith.select %19, %5, %20 : vector<8x128xi1>, vector<8x128xf32>
    %cst_12 = arith.constant dense<0.000000e+00> : vector<8xf32>
    %22 = vector.multi_reduction <add>, %21, %cst_12 [1] : vector<8x128xf32> to vector<8xf32>
    %23 = vector.shape_cast %22 : vector<8xf32> to vector<8x1xf32>
    %c0_i32 = arith.constant 0 : i32
    %24 = vector.broadcast %c0_i32 : i32 to vector<8x1xi32>
    %25 = arith.cmpi sge, %16, %24 : vector<8x1xi32>
    %c8_i32 = arith.constant 8 : i32
    %26 = vector.broadcast %c8_i32 : i32 to vector<8x1xi32>
    %27 = arith.cmpi slt, %16, %26 : vector<8x1xi32>
    %28 = arith.andi %25, %27 : vector<8x1xi1>
    %29 = arith.subf %15, %23 : vector<8x1xf32>
    %cst_13 = arith.constant 0.000000e+00 : f32
    %30 = vector.broadcast %cst_13 : f32 to vector<8x1xf32>
    %31 = arith.select %28, %29, %30 : vector<8x1xi1>, vector<8x1xf32>
    %32 = vector.shape_cast %31 : vector<8x1xf32> to vector<8x1xf32>
    %33 = vector.broadcast %32 : vector<8x1xf32> to vector<8x128xf32>
    %c0_14 = arith.constant 0 : index
    %c0_15 = arith.constant 0 : index
    %34 = vector.load %arg6[%c0_14, %c0_15] : memref<8x128xf32, #tpu.memory_space<vmem>>, vector<8x128xf32>
    tpu.vector_store %arg6[%c0_14, %c0_15], %33 {strides = array<i32>} : memref<8x128xf32, #tpu.memory_space<vmem>>, vector<8x128xf32>,
    return
  }
  func.func @transform_0(%arg0: i32) -> (i32, i32) {
    %c0_i32 = arith.constant 0 : i32
    %c0_i32_0 = arith.constant 0 : i32
    return %arg0, %c0_i32 : i32, i32
  }
  func.func @transform_1(%arg0: i32) -> (i32, i32) {
    %c0_i32 = arith.constant 0 : i32
    %c0_i32_0 = arith.constant 0 : i32
    %c0_i32_1 = arith.constant 0 : i32
    return %c0_i32, %c0_i32_0 : i32, i32
  }
  func.func @transform_2(%arg0: i32) -> (i32, i32) {
    %c0_i32 = arith.constant 0 : i32
    %c0_i32_0 = arith.constant 0 : i32
    %c0_i32_1 = arith.constant 0 : i32
    return %c0_i32, %c0_i32_0 : i32, i32
  }
  func.func @transform_3(%arg0: i32) -> (i32, i32) {
    %c0_i32 = arith.constant 0 : i32
    %c0_i32_0 = arith.constant 0 : i32
    return %arg0, %c0_i32 : i32, i32
  }
  func.func @transform_4(%arg0: i32) -> (i32, i32) {
    %c0_i32 = arith.constant 0 : i32
    %c0_i32_0 = arith.constant 0 : i32
    return %arg0, %c0_i32 : i32, i32
  }
  func.func @transform_5(%arg0: i32) -> (i32, i32) {
    %c0_i32 = arith.constant 0 : i32
    %c0_i32_0 = arith.constant 0 : i32
    return %arg0, %c0_i32 : i32, i32
  }
}

</mosaic_0001>

<llo_original>
// kernel: classifier_head.1
$region0: #{classifier_head.1}
  #allocation0 [shape = 'u32[]', space=smem, size = 0x4, offset = 0x4, fixed_abs, tag = 'smem constant byte address 0x4 - core index']
  #allocation1 [shape = 'u32[144,128]{1,0:T(1,128)}', space=vmem, size = 0x12000, scoped, tag = 'internal scratch']
  %s0 = inlined_call_operand.vmem [shape: bf16[16,128], index: 0, kind: input, shape index: {}]
  %s1 = inlined_call_operand.vmem [shape: bf16[128,128], index: 1, kind: input, shape index: {}]
  %s2 = inlined_call_operand.vmem [shape: f32[1,128], index: 2, kind: input, shape index: {}]
  %s3 = inlined_call_operand.vmem [shape: s32[16,1], index: 3, kind: input, shape index: {}]
  %s4 = inlined_call_operand.vmem [shape: f32[16,128], index: 4, kind: output, shape index: {0}]
  %s5 = inlined_call_operand.vmem [shape: f32[16,128], index: 5, kind: output, shape index: {1}]
  %6 = xla_tuple %s4, %s5
  %s7 = sld [smem:[#allocation0]]
  $region57: #{classifier_head.1} parent=0
    _
  %s9 = ssub.s32 1, %s7
  %s10 = scalar_select 0, %s9, %s7
  loop: start=0, step=1, limit=4
  $region2: #{classifier_head.1} parent=0 // loop_pre_header
    _
  $region3: #{classifier_head.1} parent=0 // loop_header
    %s12 = sphi 0, %s16
    %p13 = scmp.ge.s32.totalorder %s12, 4
    %s22 = sphi 0, %s24
    %s25 = sphi 0, %s22
    %s26 = sphi 0, %s25
    %s42 = sphi 0, %s26
    %s46 = sphi 0, %s46
    %s48 = sphi 0, %s46
    %s49 = sphi 0, %s48
    %s63 = sphi 0, %s49
    %s67 = sphi 0, %s67
    %s69 = sphi 0, %s67
    %s70 = sphi 0, %s69
    %s84 = sphi 0, %s70
    %s90 = sphi 0, %s92
    %s93 = sphi 0, %s90
    %s94 = sphi 0, %s93
    %s110 = sphi 0, %s94
    %s116 = sphi 0, %s118
    %s119 = sphi 0, %s116
    %s120 = sphi 0, %s119
    %s136 = sphi 0, %s120
    %s142 = sphi 0, %s144
    %s145 = sphi 0, %s142
    %s146 = sphi 0, %s145
    %s162 = sphi 0, %s146
  $region4: #{classifier_head.1} parent=0 // loop_header_branch
    %15 = sbr.rel (%p13) target = $region8
  $region5: #{classifier_head.1} parent=0 // loop_body
    %s17 = ssub.s32 %s12, 1
    %s18 = ssub.s32 %s12, 2
    %s19 = sadd.s32 %s12, 1
    %s20 = ssub.s32 %s12, %s19
    %p21 = scmp.eq.s32.totalorder %s20, 0
    %s23 = sadd.s32 %s22, 1
    %s24 = scalar_select %p21, %s22, %s23
    %p27 = pneg %p21
    %p28 = scmp.eq.s32.totalorder %s12, 1
    %p29 = por %p27, %p28
    %p30 = scmp.ne.s32.totalorder %s22, %s25
    %p31 = scmp.eq.s32.totalorder %s12, 0
    %p32 = por %p30, %p31
    %p33 = scmp.ne.s32.totalorder %s22, %s25
    %p34 = scmp.eq.s32.totalorder %s17, 1
    %p35 = por %p33, %p34
    %p36 = scmp.ne.s32.totalorder %s25, %s26
    %p37 = scmp.eq.s32.totalorder %s17, 0
    %p38 = por %p36, %p37
    %p39 = scmp.ne.s32.totalorder %s25, %s26
    %p40 = scmp.eq.s32.totalorder %s18, 1
    %p41 = por %p39, %p40
    %p43 = scmp.ne.s32.totalorder %s26, %s42
    %p44 = scmp.eq.s32.totalorder %s18, 0
    %p45 = por %p43, %p44
    %s47 = sadd.s32 %s46, 1
    %p50 = scmp.eq.s32.totalorder %s12, 1
    %p51 = scmp.ne.s32.totalorder %s46, %s48
    %p52 = scmp.eq.s32.totalorder %s12, 0
    %p53 = por %p51, %p52
    %p54 = scmp.ne.s32.totalorder %s46, %s48
    %p55 = scmp.eq.s32.totalorder %s17, 1
    %p56 = por %p54, %p55
    %p57 = scmp.ne.s32.totalorder %s48, %s49
    %p58 = scmp.eq.s32.totalorder %s17, 0
    %p59 = por %p57, %p58
    %p60 = scmp.ne.s32.totalorder %s48, %s49
    %p61 = scmp.eq.s32.totalorder %s18, 1
    %p62 = por %p60, %p61
    %p64 = scmp.ne.s32.totalorder %s49, %s63
    %p65 = scmp.eq.s32.totalorder %s18, 0
    %p66 = por %p64, %p65
    %s68 = sadd.s32 %s67, 1
    %p71 = scmp.eq.s32.totalorder %s12, 1
    %p72 = scmp.ne.s32.totalorder %s67, %s69
    %p73 = scmp.eq.s32.totalorder %s12, 0
    %p74 = por %p72, %p73
    %p75 = scmp.ne.s32.totalorder %s67, %s69
    %p76 = scmp.eq.s32.totalorder %s17, 1
    %p77 = por %p75, %p76
    %p78 = scmp.ne.s32.totalorder %s69, %s70
    %p79 = scmp.eq.s32.totalorder %s17, 0
    %p80 = por %p78, %p79
    %p81 = scmp.ne.s32.totalorder %s69, %s70
    %p82 = scmp.eq.s32.totalorder %s18, 1
    %p83 = por %p81, %p82
    %p85 = scmp.ne.s32.totalorder %s70, %s84
    %p86 = scmp.eq.s32.totalorder %s18, 0
    %p87 = por %p85, %p86
    %s88 = ssub.s32 %s12, %s19
    %p89 = scmp.eq.s32.totalorder %s88, 0
    %s91 = sadd.s32 %s90, 1
    %s92 = scalar_select %p89, %s90, %s91
    %p95 = pneg %p89
    %p96 = scmp.eq.s32.totalorder %s12, 1
    %p97 = por %p95, %p96
    %p98 = scmp.ne.s32.totalorder %s90, %s93
    %p99 = scmp.eq.s32.totalorder %s12, 0
    %p100 = por %p98, %p99
    %p101 = scmp.ne.s32.totalorder %s90, %s93
    %p102 = scmp.eq.s32.totalorder %s17, 1
    %p103 = por %p101, %p102
    %p104 = scmp.ne.s32.totalorder %s93, %s94
    %p105 = scmp.eq.s32.totalorder %s17, 0
    %p106 = por %p104, %p105
    %p107 = scmp.ne.s32.totalorder %s93, %s94
    %p108 = scmp.eq.s32.totalorder %s18, 1
    %p109 = por %p107, %p108
    %p111 = scmp.ne.s32.totalorder %s94, %s110
    %p112 = scmp.eq.s32.totalorder %s18, 0
    %p113 = por %p111, %p112
    %s114 = ssub.s32 %s12, %s19
    %p115 = scmp.eq.s32.totalorder %s114, 0
    %s117 = sadd.s32 %s116, 1
    %s118 = scalar_select %p115, %s116, %s117
    %p121 = pneg %p115
    %p122 = scmp.eq.s32.totalorder %s12, 1
    %p123 = por %p121, %p122
    %p124 = scmp.ne.s32.totalorder %s116, %s119
    %p125 = scmp.eq.s32.totalorder %s12, 0
    %p126 = por %p124, %p125
    %p127 = scmp.ne.s32.totalorder %s116, %s119
    %p128 = scmp.eq.s32.totalorder %s17, 1
    %p129 = por %p127, %p128
    %p130 = scmp.ne.s32.totalorder %s119, %s120
    %p131 = scmp.eq.s32.totalorder %s17, 0
    %p132 = por %p130, %p131
    %p133 = scmp.ne.s32.totalorder %s119, %s120
    %p134 = scmp.eq.s32.totalorder %s18, 1
    %p135 = por %p133, %p134
    %p137 = scmp.ne.s32.totalorder %s120, %s136
    %p138 = scmp.eq.s32.totalorder %s18, 0
    %p139 = por %p137, %p138
    %s140 = ssub.s32 %s12, %s19
    %p141 = scmp.eq.s32.totalorder %s140, 0
    %s143 = sadd.s32 %s142, 1
    %s144 = scalar_select %p141, %s142, %s143
    %p147 = pneg %p141
    %p148 = scmp.eq.s32.totalorder %s12, 1
    %p149 = por %p147, %p148
    %p150 = scmp.ne.s32.totalorder %s142, %s145
    %p151 = scmp.eq.s32.totalorder %s12, 0
    %p152 = por %p150, %p151
    %p153 = scmp.ne.s32.totalorder %s142, %s145
    %p154 = scmp.eq.s32.totalorder %s17, 1
    %p155 = por %p153, %p154
    %p156 = scmp.ne.s32.totalorder %s145, %s146
    %p157 = scmp.eq.s32.totalorder %s17, 0
    %p158 = por %p156, %p157
    %p159 = scmp.ne.s32.totalorder %s145, %s146
    %p160 = scmp.eq.s32.totalorder %s18, 1
    %p161 = por %p159, %p160
    %p163 = scmp.ne.s32.totalorder %s146, %s162
    %p164 = scmp.eq.s32.totalorder %s18, 0
    %p165 = por %p163, %p164
    %p166 = scmp.le.s32.totalorder 1, %s12
    %p167 = scmp.lt.s32.totalorder %s12, 3
    %p168 = pnand %p166, %p167
    %p169 = pneg %p168
    // Predicated region
    $region9: #{classifier_head.1} parent=5 // pred_check
      _
    $region10: #{classifier_head.1} parent=5 // pred_check_branch
      %171 = sbr.rel (%p168) target = $region12
    $region11: #{classifier_head.1} parent=5 // pred_region
      %s172 = ssub.s32 %s12, 1
      // Predicated region
      $region13: #{classifier_head.1} parent=11 // pred_check
        %p173 = pneg %p59
      $region14: #{classifier_head.1} parent=11 // pred_check_branch
        %175 = sbr.rel (%p173) target = $region16
      $region15: #{classifier_head.1} parent=11 // pred_region
        _
      $region16: #{classifier_head.1} parent=11 // pred_fallthru
        _
      // Predicated region
      $region17: #{classifier_head.1} parent=11 // pred_check
        %p176 = pneg %p80
      $region18: #{classifier_head.1} parent=11 // pred_check_branch
        %178 = sbr.rel (%p176) target = $region20
      $region19: #{classifier_head.1} parent=11 // pred_region
        _
      $region20: #{classifier_head.1} parent=11 // pred_fallthru
        _
    $region12: #{classifier_head.1} parent=5 // pred_fallthru
      _
    %p179 = scmp.lt.s32.totalorder %s12, 2
    // Predicated region
    $region21: #{classifier_head.1} parent=5 // pred_check
      %p180 = pneg %p179
    $region22: #{classifier_head.1} parent=5 // pred_check_branch
      %182 = sbr.rel (%p180) target = $region24
    $region23: #{classifier_head.1} parent=5 // pred_region
      // Predicated region
      $region25: #{classifier_head.1} parent=23 // pred_check
        %p183 = pneg %p32
      $region26: #{classifier_head.1} parent=23 // pred_check_branch
        %185 = sbr.rel (%p183) target = $region28
      $region27: #{classifier_head.1} parent=23 // pred_region
        %p186 = scmp.lt.s32.totalorder %s12, 1
        %s187 = scalar_select %p186, %s12, 1
        %s188 = smul.addr %s187, 4
        %s189 = scalar_lea.vmem %s0, %s188
      $region28: #{classifier_head.1} parent=23 // pred_fallthru
        _
      // Predicated region
      $region29: #{classifier_head.1} parent=23 // pred_check
        %p190 = pneg %p100
      $region30: #{classifier_head.1} parent=23 // pred_check_branch
        %192 = sbr.rel (%p190) target = $region32
      $region31: #{classifier_head.1} parent=23 // pred_region
        %p193 = scmp.lt.s32.totalorder %s12, 1
        %s194 = scalar_select %p193, %s12, 1
        %s195 = smul.addr %s194, 8
        %s196 = scalar_lea.vmem %s3, %s195
      $region32: #{classifier_head.1} parent=23 // pred_fallthru
        _
    $region24: #{classifier_head.1} parent=5 // pred_fallthru
      _
    %p197 = scmp.le.s32.totalorder 1, %s12
    %p198 = scmp.lt.s32.totalorder %s12, 3
    %p199 = pnand %p197, %p198
    %p200 = pneg %p199
    // Predicated region
    $region33: #{classifier_head.1} parent=5 // pred_check
      _
    $region34: #{classifier_head.1} parent=5 // pred_check_branch
      %202 = sbr.rel (%p199) target = $region36
    $region35: #{classifier_head.1} parent=5 // pred_region
      %s203 = ssub.s32 %s12, 1
      %p204 = scmp.lt.s32.totalorder %s17, 1
      %s205 = scalar_select %p204, %s17, 1
      %s206 = smul.addr %s205, 4
      %s207 = scalar_lea.vmem %s0, %s206
      %p208 = pneg %p38
      %p209 = pneg %p35
      %p210 = pneg %p59
      %p211 = pneg %p56
      %p212 = pneg %p80
      %p213 = pneg %p77
      %p214 = scmp.lt.s32.totalorder %s17, 1
      %s215 = scalar_select %p214, %s17, 1
      %s216 = smul.addr %s215, 8
      %s217 = scalar_lea.vmem %s3, %s216
      %p218 = pneg %p106
      %p219 = pneg %p103
      %p220 = pneg %p132
      %p221 = pneg %p129
      %p222 = scmp.lt.s32.totalorder %s17, 1
      %s223 = scalar_select %p222, %s17, 1
      %s224 = smul.addr %s223, 8
      %s225 = scalar_lea.vmem %s4, %s224
      %p226 = pneg %p158
      %p227 = pneg %p155
      %p228 = scmp.lt.s32.totalorder %s17, 1
      %s229 = scalar_select %p228, %s17, 1
      %s230 = smul.addr %s229, 8
      %s231 = scalar_lea.vmem %s5, %s230
      %p232 = scmp.lt.s32.totalorder %s17, 1
      %s233 = scalar_select %p232, %s17, 1
      %s234 = smul.addr %s233, 4
      %s235 = scalar_lea.vmem %s0, %s234
      %p236 = scmp.lt.s32.totalorder %s17, 1
      %s237 = scalar_select %p236, %s17, 1
      %s238 = smul.addr %s237, 8
      %s239 = scalar_lea.vmem %s3, %s238
      %p240 = scmp.lt.s32.totalorder %s17, 1
      %s241 = scalar_select %p240, %s17, 1
      %s242 = smul.addr %s241, 8
      %s243 = scalar_lea.vmem %s4, %s242
      %p244 = scmp.lt.s32.totalorder %s17, 1
      %s245 = scalar_select %p244, %s17, 1
      %s246 = smul.addr %s245, 8
      %s247 = scalar_lea.vmem %s5, %s246
      %v249 = vld [vmem:[%s235] sm:$0xf]
      %v250 = vld [vmem:[%s1] sm:$0xf]
      %v251 = vld [vmem:[%s1 + $0x4] sm:$0xf]
      %v252 = vld [vmem:[%s1 + $0x8] sm:$0xf]
      %v253 = vld [vmem:[%s1 + $0xc] sm:$0xf]
      %v254 = vld [vmem:[%s1 + $0x10] sm:$0xf]
      %v255 = vld [vmem:[%s1 + $0x14] sm:$0xf]
      %v256 = vld [vmem:[%s1 + $0x18] sm:$0xf]
      %v257 = vld [vmem:[%s1 + $0x1c] sm:$0xf]
      %v258 = vld [vmem:[%s1 + $0x20] sm:$0xf]
      %v259 = vld [vmem:[%s1 + $0x24] sm:$0xf]
      %v260 = vld [vmem:[%s1 + $0x28] sm:$0xf]
      %v261 = vld [vmem:[%s1 + $0x2c] sm:$0xf]
      %v262 = vld [vmem:[%s1 + $0x30] sm:$0xf]
      %v263 = vld [vmem:[%s1 + $0x34] sm:$0xf]
      %v264 = vld [vmem:[%s1 + $0x38] sm:$0xf]
      %v265 = vld [vmem:[%s1 + $0x3c] sm:$0xf]
      %v266 = vld [vmem:[%s2] sm:$0x1]
      %v268 = vlaneseq
      %v269 = vshrl.u32 %v268, 7
      %v270 = vsub.s32 0, %v269
      %v271 = vrot.slane %v266, %v270
      %v289 = vunpack.c.l.b16 %v250
      %v290 = vunpack.c.l.b16 %v251
      %v291 = vunpack.c.l.b16 %v252
      %v292 = vunpack.c.l.b16 %v253
      %v293 = vunpack.c.l.b16 %v254
      %v294 = vunpack.c.l.b16 %v255
      %v295 = vunpack.c.l.b16 %v256
      %v296 = vunpack.c.l.b16 %v257
      %v297 = vunpack.c.l.b16 %v258
      %v298 = vunpack.c.l.b16 %v259
      %v299 = vunpack.c.l.b16 %v260
      %v300 = vunpack.c.l.b16 %v261
      %v301 = vunpack.c.l.b16 %v262
      %v302 = vunpack.c.l.b16 %v263
      %v303 = vunpack.c.l.b16 %v264
      %v304 = vunpack.c.l.b16 %v265
      %v305 = vpack.c.b16 %v290, %v289
      %v306 = vpack.c.b16 %v292, %v291
      %v307 = vpack.c.b16 %v294, %v293
      %v308 = vpack.c.b16 %v296, %v295
      %v309 = vpack.c.b16 %v298, %v297
      %v310 = vpack.c.b16 %v300, %v299
      %v311 = vpack.c.b16 %v302, %v301
      %v312 = vpack.c.b16 %v304, %v303
      %321 = vmatprep.subr.bf16.mxu0 0
      %322 = vmatpush1.bf16.msra.mxu0 %v312
      %323 = vmatprep.subr.bf16.mxu0 0
      %324 = vmatpush1.bf16.msra.mxu0 %v311
      %325 = vmatprep.subr.bf16.mxu0 0
      %326 = vmatpush1.bf16.msra.mxu0 %v310
      %327 = vmatprep.subr.bf16.mxu0 0
      %328 = vmatpush1.bf16.msra.mxu0 %v309
      %329 = vmatprep.subr.bf16.mxu0 0
      %330 = vmatpush1.bf16.msra.mxu0 %v308
      %331 = vmatprep.subr.bf16.mxu0 0
      %332 = vmatpush1.bf16.msra.mxu0 %v307
      %333 = vmatprep.subr.bf16.mxu0 0
      %334 = vmatpush1.bf16.msra.mxu0 %v306
      %335 = vmatprep.subr.bf16.mxu0 0
      %336 = vmatpush1.bf16.msra.mxu0 %v305
      %337 = vmatprep.subr.bf16.mxu0 0
      %338 = vmatpush2.bf16.msra.mxu0 0
      %339 = vmatprep.subr.bf16.mxu0 0
      %340 = vmatpush2.bf16.msra.mxu0 0
      %341 = vmatprep.subr.bf16.mxu0 0
      %342 = vmatpush2.bf16.msra.mxu0 0
      %343 = vmatprep.subr.bf16.mxu0 0
      %344 = vmatpush2.bf16.msra.mxu0 0
      %345 = vmatprep.subr.bf16.mxu0 0
      %346 = vmatpush2.bf16.msra.mxu0 0
      %347 = vmatprep.subr.bf16.mxu0 0
      %348 = vmatpush2.bf16.msra.mxu0 0
      %349 = vmatprep.subr.bf16.mxu0 0
      %350 = vmatpush2.bf16.msra.mxu0 0
      %351 = vmatprep.subr.bf16.mxu0 0
      %352 = vmatpush2.bf16.msra.mxu0 0
      %353 = vmatprep.mubr.bf16.mxu0 0
      %354 = vmatmul.mubr.bf16.gmra.mxu0 %v249
      %v355 = vpop.f32.mrf.mxu0
      %v356 = vadd.f32 %v271, %v355
      %v357 = vpop.f32.mrf.mxu0
      %v358 = vpop.f32.mrf.mxu0
      %v359 = vpop.f32.mrf.mxu0
      %360 = vdwg.mxu0
      %361 = vst [vmem:[%s243] sm:$0xff] %v356
      %362 = vmax.xlane.f32.xlu0 %v356
      %v363 = vpop.xlane.xlu0 %362
      %v364 = vsub.f32 %v356, %v363
      %v365 = vmul.f32 %v364, 1.442695
      %v366 = vpow.pop %v365
      %367 = vadd.xlane.f32.xlu0 %v366
      %v368 = vpop.xlane.xlu0 %367
      %v369 = vlog2.pop %v368
      %v370 = vmul.f32 %v369, 0.6931472
      %v371 = vadd.f32 %v370, %v363
      %v372 = vld [vmem:[%s239] sm:$0xff]
      %v373 = vlaneseq
      %v374 = vand.u32 %v373, 127
      %375 = vset.pattern.permute.xlu0 0
      %376 = vperm.xlu0 %375, %v372
      %v377 = vpop.permute.xlu0 %376
      %vm378 = vcmp.eq.s32.totalorder %v374, %v377
      %v379 = vsel %vm378, %v356, 0.0
      %380 = vadd.xlane.f32.xlu0 %v379
      %v381 = vpop.xlane.xlu0 %380
      %vm382 = vcmp.ge.s32.totalorder %v372, 0
      %vm383 = vcmp.lt.s32.totalorder %v372, 8
      %vm384 = vmand %vm382, %vm383
      %v385 = vsub.f32 %v371, %v381
      %v386 = vsel %vm384, %v385, 0.0
      %388 = vset.pattern.permute.xlu0 0
      %389 = vperm.xlu0 %388, %v386
      %v390 = vpop.permute.xlu0 %389
      %392 = vst [vmem:[%s247] sm:$0xff] %v390
      %p393 = scmp.lt.s32.totalorder %s17, 1
      %s394 = scalar_select %p393, %s17, 1
      %s395 = smul.addr %s394, 8
      %s396 = scalar_lea.vmem %s4, %s395
      %p397 = scmp.lt.s32.totalorder %s17, 1
      %s398 = scalar_select %p397, %s17, 1
      %s399 = smul.addr %s398, 8
      %s400 = scalar_lea.vmem %s5, %s399
      // Predicated region
      $region37: #{classifier_head.1} parent=35 // pred_check
        %p401 = pneg %p129
      $region38: #{classifier_head.1} parent=35 // pred_check_branch
        %403 = sbr.rel (%p401) target = $region40
      $region39: #{classifier_head.1} parent=35 // pred_region
        _
      $region40: #{classifier_head.1} parent=35 // pred_fallthru
        _
      // Predicated region
      $region41: #{classifier_head.1} parent=35 // pred_check
        %p404 = pneg %p155
      $region42: #{classifier_head.1} parent=35 // pred_check_branch
        %406 = sbr.rel (%p404) target = $region44
      $region43: #{classifier_head.1} parent=35 // pred_region
        _
      $region44: #{classifier_head.1} parent=35 // pred_fallthru
        _
    $region36: #{classifier_head.1} parent=5 // pred_fallthru
      _
    %p407 = scmp.le.s32.totalorder 2, %s12
    // Predicated region
    $region45: #{classifier_head.1} parent=5 // pred_check
      %p408 = pneg %p407
    $region46: #{classifier_head.1} parent=5 // pred_check_branch
      %410 = sbr.rel (%p408) target = $region48
    $region47: #{classifier_head.1} parent=5 // pred_region
      %s411 = ssub.s32 %s12, 2
      // Predicated region
      $region49: #{classifier_head.1} parent=47 // pred_check
        %p412 = pneg %p135
      $region50: #{classifier_head.1} parent=47 // pred_check_branch
        %414 = sbr.rel (%p412) target = $region52
      $region51: #{classifier_head.1} parent=47 // pred_region
        %p415 = scmp.lt.s32.totalorder %s18, 1
        %s416 = scalar_select %p415, %s18, 1
        %s417 = smul.addr %s416, 8
        %s418 = scalar_lea.vmem %s4, %s417
      $region52: #{classifier_head.1} parent=47 // pred_fallthru
        _
      // Predicated region
      $region53: #{classifier_head.1} parent=47 // pred_check
        %p419 = pneg %p161
      $region54: #{classifier_head.1} parent=47 // pred_check_branch
        %421 = sbr.rel (%p419) target = $region56
      $region55: #{classifier_head.1} parent=47 // pred_region
        %p422 = scmp.lt.s32.totalorder %s18, 1
        %s423 = scalar_select %p422, %s18, 1
        %s424 = smul.addr %s423, 8
        %s425 = scalar_lea.vmem %s5, %s424
      $region56: #{classifier_head.1} parent=47 // pred_fallthru
        _
    $region48: #{classifier_head.1} parent=5 // pred_fallthru
      _
  $region6: #{classifier_head.1} parent=0 // loop_footer
    %s16 = sadd.s32 1, %s12
  $region7: #{classifier_head.1} parent=0 // loop_footer_branch
    %11 = sbr.rel target = $region3
  $region8: #{classifier_head.1} parent=0 // loop_exit
    _

</llo_original>
